<compile_context>
chip_gen: v7x
topology: tpu7x:2x2x1
jax: 0.10.0
libtpu: 0.0.40
codegen_flags: <defaults>
</compile_context>

<pallas_src>
import math
from functools import partial

import jax
import jax.numpy as jnp
from jax import lax
from jax.experimental import pallas as pl
from jax.experimental.pallas import tpu as pltpu


# ----------------------------------------------------------------------------
# Shared helpers
# ----------------------------------------------------------------------------
def _pick_chunk_rows(batch, seq, tokens_per_chunk=256):
    """Pick TB (batch rows per grid step) dividing `batch`, ~tokens_per_chunk tokens."""
    tb = max(1, min(batch, max(1, tokens_per_chunk // seq)))
    while batch % tb:
        tb -= 1
    if (tb * seq) % 8 != 0:            # keep flattened token axis sublane-aligned
        tb = batch
    # Prefer >= 2 chunks so the "parallel" chunk axis can shard across v7x's 2 TCs.
    if batch // tb < 2 and batch > 1:
        for cand in range(tb - 1, 0, -1):
            if batch % cand == 0 and (cand * seq) % 8 == 0:
                tb = cand
                break
    return tb


def _layer_norm(y, gamma, beta, eps=1e-12):
    mu = jnp.mean(y, axis=-1, keepdims=True)
    d = y - mu
    var = jnp.mean(d * d, axis=-1, keepdims=True)       # unbiased=False
    return gamma * (d * lax.rsqrt(var + eps)) + beta     # rsqrt -> EUP slot


# ----------------------------------------------------------------------------
# Embedding: token gather + sinusoidal positional encoding (+ eval dropout = identity)
# ----------------------------------------------------------------------------
def _embedding_kernel(ids_ref, tok_ref, pos_ref, out_ref):
    # ids_ref: (T, 1) int32 ids for this chunk; tok_ref: (V, D) resident table;
    # pos_ref: (S, D) resident positional rows; out_ref: (TB, S, D)
    tb, s, d = out_ref.shape
    v = tok_ref.shape[0]
    t = tb * s
    ids = ids_ref[...]                                                     # (T, 1)
    # One-hot gather through the MXU (toy vocab only — see TODO at file top).
    onehot = (ids == lax.broadcasted_iota(jnp.int32, (t, v), 1)).astype(tok_ref.dtype)
    emb = jnp.dot(onehot, tok_ref[...], preferred_element_type=jnp.float32)  # (T, D)
    out_ref[...] = emb.reshape(tb, s, d) + pos_ref[...][None, :, :]


def transformer_embedding(ids, tok_weight, pos_table, *, tokens_per_chunk=256):
    """ids: (B, S) int32; tok_weight: (V, D) f32 (row 1 zeroed); pos_table: (max_len, D)."""
    B, S = ids.shape
    V, D = tok_weight.shape
    assert S <= pos_table.shape[0], "sequence length exceeds positional table (max_len)"

    tb = _pick_chunk_rows(B, S, tokens_per_chunk)
    grid = (B // tb,)

    pos = pos_table[:S]                                   # (S, D), fetched once
    ids_flat = ids.reshape(B * S, 1).astype(jnp.int32)

    return pl.pallas_call(
        _embedding_kernel,
        out_shape=jax.ShapeDtypeStruct((B, S, D), jnp.float32),
        grid=grid,
        in_specs=[
            pl.BlockSpec((tb * S, 1), lambda c: (c, 0)),   # ids for this chunk
            pl.BlockSpec((V, D), lambda c: (0, 0)),        # whole table, fetched once
            pl.BlockSpec((S, D), lambda c: (0, 0)),        # positional slice, fetched once
        ],
        out_specs=pl.BlockSpec((tb, S, D), lambda c: (c, 0, 0)),
        compiler_params=pltpu.CompilerParams(
            dimension_semantics=("parallel",),
            vmem_limit_bytes=32 * 1024 * 1024),
    )(ids_flat, tok_weight, pos)


# ----------------------------------------------------------------------------
# Fused N-layer encoder: MHA + residual + LN + FFN + residual + LN, all layers in one call
# ----------------------------------------------------------------------------
def _encoder_layers_kernel(x_ref, bias_ref,
                           wq_ref, bq_ref, wk_ref, bk_ref, wv_ref, bv_ref,
                           wo_ref, bo_ref, g1_ref, be1_ref,
                           w1_ref, bf1_ref, w2_ref, bf2_ref, g2_ref, be2_ref,
                           out_ref, act_ref, *, n_head):
    layer = pl.program_id(1)

    @pl.when(layer == 0)
    def _():                                   # start of a chunk: load embedded input
        act_ref[...] = x_ref[...]

    tb, s, d = act_ref.shape
    t = tb * s
    dh = d // n_head
    scale = 1.0 / math.sqrt(dh)

    x = act_ref[...].reshape(t, d)             # (T, D) f32 activations for this chunk
    x_bf = x.astype(jnp.bfloat16)

    def proj(w_ref, b_ref):                    # bf16 MXU matmul, f32 accumulate
        return jnp.dot(x_bf, w_ref[0], preferred_element_type=jnp.float32) + b_ref[0]

    # --- multi-head self-attention (full-width projections over the whole chunk) ---
    q = proj(wq_ref, bq_ref)                   # (T, D) f32
    k = proj(wk_ref, bk_ref)
    v = proj(wv_ref, bv_ref)

    bias = bias_ref[...]                       # (TB, 1, S) additive mask bias, hoisted
    wo = wo_ref[0]                             # (D, D) bf16

    attn = jnp.zeros((t, d), jnp.float32)
    for h in range(n_head):                    # small static loop; rows batched per head
        sl = slice(h * dh, (h + 1) * dh)
        qh = q[:, sl].astype(jnp.bfloat16).reshape(tb, s, dh)
        kh = k[:, sl].astype(jnp.bfloat16).reshape(tb, s, dh)
        vh = v[:, sl].astype(jnp.bfloat16).reshape(tb, s, dh)
        sc = jnp.einsum("bqd,bkd->bqk", qh, kh,
                        preferred_element_type=jnp.float32) * scale   # (TB, S, S)
        sc = sc + bias                                                  # mask over keys
        sc = sc - jnp.max(sc, axis=-1, keepdims=True)
        p = jnp.exp(sc)
        p = p * pl.reciprocal(jnp.sum(p, axis=-1, keepdims=True), approx=True)
        ctx = jnp.einsum("bqk,bkd->bqd", p.astype(jnp.bfloat16), vh,
                         preferred_element_type=jnp.float32)            # (TB, S, dh)
        # project this head with its slice of W_o and accumulate: no concat needed
        attn = attn + jnp.dot(ctx.reshape(t, dh).astype(jnp.bfloat16), wo[sl, :],
                              preferred_element_type=jnp.float32)
    attn = attn + bo_ref[0]
    # dropout1: eval-mode identity
    x1 = _layer_norm(attn + x, g1_ref[0], be1_ref[0])

    # --- position-wise feed-forward ---
    h1 = jnp.maximum(jnp.dot(x1.astype(jnp.bfloat16), w1_ref[0],
                             preferred_element_type=jnp.float32) + bf1_ref[0], 0.0)
    # FFN dropout + dropout2: eval-mode identity
    h2 = jnp.dot(h1.astype(jnp.bfloat16), w2_ref[0],
                 preferred_element_type=jnp.float32) + bf2_ref[0]
    x2 = _layer_norm(h2 + x1, g2_ref[0], be2_ref[0])

    y = x2.reshape(tb, s, d)
    act_ref[...] = y                            # carry activation to the next layer

    @pl.when(layer == pl.num_programs(1) - 1)
    def _():
        out_ref[...] = y.astype(out_ref.dtype)


_W_NAMES = ("wq", "bq", "wk", "bk", "wv", "bv", "wo", "bo",
            "g1", "be1", "w1", "bf1", "w2", "bf2", "g2", "be2")
_MATMUL_W = {"wq", "wk", "wv", "wo", "w1", "w2"}


def stack_layer_params(layers):
    """Stack per-layer params along a leading layer axis; matmul weights -> bf16."""
    out = {}
    for name in _W_NAMES:
        arr = jnp.stack([lp[name] for lp in layers], axis=0)
        out[name] = arr.astype(jnp.bfloat16 if name in _MATMUL_W else jnp.float32)
    return out


def encoder_layers(x, mask_bias, stacked, *, n_head, tokens_per_chunk=256):
    """x: (B, S, D) f32; mask_bias: (B, 1, S) f32 additive bias (0 keep, -1e4 pad)."""
    B, S, D = x.shape
    L = stacked["wq"].shape[0]
    tb = _pick_chunk_rows(B, S, tokens_per_chunk)
    num_chunks = B // tb

    weights = [stacked[n] for n in _W_NAMES]

    def wspec(a):                               # per-layer block, indexed by layer axis
        return pl.BlockSpec((1,) + a.shape[1:], lambda c, l: (l, 0, 0))

    in_specs = ([pl.BlockSpec((tb, S, D), lambda c, l: (c, 0, 0)),
                 pl.BlockSpec((tb, 1, S), lambda c, l: (c, 0, 0))]
                + [wspec(a) for a in weights])

    return pl.pallas_call(
        partial(_encoder_layers_kernel, n_head=n_head),
        out_shape=jax.ShapeDtypeStruct((B, S, D), x.dtype),
        grid=(num_chunks, L),
        in_specs=in_specs,
        out_specs=pl.BlockSpec((tb, S, D), lambda c, l: (c, 0, 0)),
        scratch_shapes=[pltpu.VMEM((tb, S, D), jnp.float32)],   # layer-to-layer activation
        compiler_params=pltpu.CompilerParams(
            dimension_semantics=("parallel", "arbitrary"),
            vmem_limit_bytes=32 * 1024 * 1024),
    )(x, mask_bias, *weights)


def encoder_forward(ids, src_mask, params, *, n_head):
    x = transformer_embedding(ids, params["tok"], params["pos"])
    # masked_fill(mask==0, -10000) as a hoisted additive bias over the key axis
    bias = jnp.where(src_mask == 0, -10000.0, 0.0).astype(jnp.float32)[:, None, :]
    stacked = stack_layer_params(params["layers"])
    return encoder_layers(x, bias, stacked, n_head=n_head)


# ----------------------------------------------------------------------------
# Helpers: sinusoidal table + pure-JAX f32 reference
# ----------------------------------------------------------------------------
def make_positional_encoding(max_len, d_model):
    pos = jnp.arange(max_len, dtype=jnp.float32)[:, None]
    _2i = jnp.arange(0, d_model, 2, dtype=jnp.float32)
    angle = pos / jnp.power(10000.0, _2i / float(d_model))
    enc = jnp.zeros((max_len, d_model), dtype=jnp.float32)
    enc = enc.at[:, 0::2].set(jnp.sin(angle))
    enc = enc.at[:, 1::2].set(jnp.cos(angle))
    return enc


def ref_encoder(ids, mask, params, *, n_head):
    B, S = ids.shape
    D = params["tok"].shape[1]
    dh = D // n_head
    x = params["tok"][ids] + params["pos"][:S][None]
    for lp in params["layers"]:
        q = x @ lp["wq"] + lp["bq"]
        k = x @ lp["wk"] + lp["bk"]
        v = x @ lp["wv"] + lp["bv"]

        def split(t):
            return t.reshape(B, S, n_head, dh).transpose(0, 2, 1, 3)

        qh, kh, vh = split(q), split(k), split(v)
        s = jnp.einsum("bhqd,bhkd->bhqk", qh, kh) / math.sqrt(dh)
        s = jnp.where(mask[:, None, None, :] == 0, -10000.0, s)
        p = jax.nn.softmax(s, axis=-1)
        ctx = jnp.einsum("bhqk,bhkd->bhqd", p, vh).transpose(0, 2, 1, 3).reshape(B, S, D)
        attn = ctx @ lp["wo"] + lp["bo"]
        x = _layer_norm(attn + x, lp["g1"], lp["be1"])
        h = jnp.maximum(x @ lp["w1"] + lp["bf1"], 0.0) @ lp["w2"] + lp["bf2"]
        x = _layer_norm(h + x, lp["g2"], lp["be2"])
    return x


# ----------------------------------------------------------------------------
if __name__ == "__main__":
    # Small shapes consistent with the module (d_model kept lane-dense = 128).
    B, S = 4, 8
    vocab, d_model, max_len = 64, 128, 16
    n_head, ffn_hidden, n_layers = 4, 256, 2
    pad_idx = 1                                   # TokenEmbedding(padding_idx=1)

    kit = iter(jax.random.split(jax.random.PRNGKey(0), 128))

    def rnd(shape, scale):
        return scale * jax.random.normal(next(kit), shape, dtype=jnp.float32)

    tok = rnd((vocab, d_model), 1.0).at[pad_idx].set(0.0)   # padding row is zero
    pos = make_positional_encoding(max_len, d_model)

    def make_layer():
        d, f = d_model, ffn_hidden
        ws = 1.0 / math.sqrt(d)
        return {
            "wq": rnd((d, d), ws), "bq": rnd((1, d), 0.02),
            "wk": rnd((d, d), ws), "bk": rnd((1, d), 0.02),
            "wv": rnd((d, d), ws), "bv": rnd((1, d), 0.02),
            "wo": rnd((d, d), ws), "bo": rnd((1, d), 0.02),
            "g1": jnp.ones((1, d), jnp.float32), "be1": jnp.zeros((1, d), jnp.float32),
            "w1": rnd((d, f), ws), "bf1": rnd((1, f), 0.02),
            "w2": rnd((f, d), 1.0 / math.sqrt(f)), "bf2": rnd((1, d), 0.02),
            "g2": jnp.ones((1, d), jnp.float32), "be2": jnp.zeros((1, d), jnp.float32),
        }

    params = {"tok": tok, "pos": pos,
              "layers": [make_layer() for _ in range(n_layers)]}

    ids = jax.random.randint(next(kit), (B, S), 2, vocab, dtype=jnp.int32)
    ids = ids.at[0, 6:].set(pad_idx)                       # exercise padding + mask path
    src_mask = (ids != pad_idx).astype(jnp.int32)          # (src != src_pad_idx)

    out = encoder_forward(ids, src_mask, params, n_head=n_head)
    out = jax.block_until_ready(out)

    ref = ref_encoder(ids, src_mask, params, n_head=n_head)
    assert out.shape == (B, S, d_model)
    err = float(jnp.max(jnp.abs(out - ref)))
    # bf16 matmul operands (f32 accumulate) -> allow ~1e-2-level deviation vs f32 reference
    assert jnp.allclose(out, ref, atol=5e-2, rtol=5e-2), f"max abs err {err}"

    print("KERNEL_OK")
</pallas_src>

<mosaic_0001>
module attributes {stable_mosaic.version = 11 : i64} {
  func.func @_embedding_kernel(%arg0: i32, %arg1: memref<16x1xi32, #tpu.memory_space<vmem>>, %arg2: memref<64x128xf32, #tpu.memory_space<vmem>>, %arg3: memref<8x128xf32, #tpu.memory_space<vmem>>, %arg4: memref<2x8x128xf32, #tpu.memory_space<vmem>>) attributes {dimension_semantics = [#tpu.dimension_semantics<parallel>], iteration_bounds = array<i64: 2>, scalar_prefetch = 0 : i64, scratch_operands = 0 : i64, tpu.core_type = #tpu.core_type<tc>, window_params = [{transform_indices = @transform_0, window_bounds = array<i64: 16, 1>}, {pipeline_mode = #tpu.pipeline_mode<synchronous>, transform_indices = @transform_1, window_bounds = array<i64: 64, 128>}, {pipeline_mode = #tpu.pipeline_mode<synchronous>, transform_indices = @transform_2, window_bounds = array<i64: 8, 128>}, {transform_indices = @transform_3, window_bounds = array<i64: 2, 8, 128>}]} {
    %c0 = arith.constant 0 : index
    %c0_0 = arith.constant 0 : index
    %0 = vector.load %arg1[%c0, %c0_0] : memref<16x1xi32, #tpu.memory_space<vmem>>, vector<16x1xi32>
    %1 = tpu.iota {dimensions = array<i32: 1>} : vector<16x64xi32>
    %2 = vector.broadcast %0 : vector<16x1xi32> to vector<16x64xi32>
    %3 = arith.cmpi eq, %2, %1 : vector<16x64xi32>
    %4 = arith.extui %3 : vector<16x64xi1> to vector<16x64xi32>
    %5 = arith.sitofp %4 : vector<16x64xi32> to vector<16x64xf32>
    %c0_1 = arith.constant 0 : index
    %c0_2 = arith.constant 0 : index
    %6 = vector.load %arg2[%c0_1, %c0_2] : memref<64x128xf32, #tpu.memory_space<vmem>>, vector<64x128xf32>
    %cst = arith.constant dense<0.000000e+00> : vector<16x128xf32>
    %7 = tpu.matmul %5, %6, %cst {dimension_numbers = #tpu.dot_dimension_numbers<[1], [0], [0], [1], [0, 0, 1, 1], [], []>} : vector<16x64xf32>, vector<64x128xf32>, vector<16x128xf32> -> vector<16x128xf32>
    %8 = vector.shape_cast %7 : vector<16x128xf32> to vector<2x8x128xf32>
    %c0_3 = arith.constant 0 : index
    %c0_4 = arith.constant 0 : index
    %9 = vector.load %arg3[%c0_3, %c0_4] : memref<8x128xf32, #tpu.memory_space<vmem>>, vector<8x128xf32>
    %10 = vector.shape_cast %9 : vector<8x128xf32> to vector<1x8x128xf32>
    %11 = vector.broadcast %10 : vector<1x8x128xf32> to vector<2x8x128xf32>
    %12 = arith.addf %8, %11 : vector<2x8x128xf32>
    %c0_5 = arith.constant 0 : index
    %c0_6 = arith.constant 0 : index
    %c0_7 = arith.constant 0 : index
    %13 = vector.load %arg4[%c0_5, %c0_6, %c0_7] : memref<2x8x128xf32, #tpu.memory_space<vmem>>, vector<2x8x128xf32>
    tpu.vector_store %arg4[%c0_5, %c0_6, %c0_7], %12 {strides = array<i32>} : memref<2x8x128xf32, #tpu.memory_space<vmem>>, vector<2x8x128xf32>,
    return
  }
  func.func @transform_0(%arg0: i32) -> (i32, i32) {
    %c0_i32 = arith.constant 0 : i32
    %c0_i32_0 = arith.constant 0 : i32
    return %arg0, %c0_i32 : i32, i32
  }
  func.func @transform_1(%arg0: i32) -> (i32, i32) {
    %c0_i32 = arith.constant 0 : i32
    %c0_i32_0 = arith.constant 0 : i32
    %c0_i32_1 = arith.constant 0 : i32
    return %c0_i32, %c0_i32_0 : i32, i32
  }
  func.func @transform_2(%arg0: i32) -> (i32, i32) {
    %c0_i32 = arith.constant 0 : i32
    %c0_i32_0 = arith.constant 0 : i32
    %c0_i32_1 = arith.constant 0 : i32
    return %c0_i32, %c0_i32_0 : i32, i32
  }
  func.func @transform_3(%arg0: i32) -> (i32, i32, i32) {
    %c0_i32 = arith.constant 0 : i32
    %c0_i32_0 = arith.constant 0 : i32
    %c0_i32_1 = arith.constant 0 : i32
    return %arg0, %c0_i32, %c0_i32_0 : i32, i32, i32
  }
}

</mosaic_0001>

<llo_original>
// kernel: tpu_custom_call.1
$region0: #{tpu_custom_call.1}
  #allocation0 [shape = 'u32[]', space=smem, size = 0x4, offset = 0x4, fixed_abs, tag = 'smem constant byte address 0x4 - core index']
  #allocation1 [shape = 'u32[144,128]{1,0:T(1,128)}', space=vmem, size = 0x12000, scoped, tag = 'internal scratch']
  %s0 = inlined_call_operand.vmem [shape: s32[32,1], index: 0, kind: input, shape index: {}]
  %s1 = inlined_call_operand.hbm [shape: f32[64,128], index: 1, kind: input, shape index: {}]
  %s2 = inlined_call_operand.vmem [shape: f32[8,128], index: 2, kind: input, shape index: {}]
  %s3 = inlined_call_operand.hbm [shape: f32[4,8,128], index: 3, kind: output, shape index: {}]
  %s4 = sld [smem:[#allocation0]]
  $region49: #{tpu_custom_call.1} parent=0
    _
  %s6 = ssub.s32 1, %s4
  %s7 = scalar_select 0, %s6, %s4
  $region1: #{tpu_custom_call.1} parent=0
    #allocation2 [shape = 'u8[32768]{0}', space=vmem, size = 0x8000, scoped, tag = 'input window, operand 1, single buffered']
    #allocation3 [shape = 's32[2]{0}', space=sflag, size = 0x8, scoped, tag = 'scoped memory for tpu_custom_call.1']
    #allocation4 [shape = 's32[2]{0}', space=sflag, size = 0x8, scoped, tag = 'scoped memory for tpu_custom_call.1']
    #allocation5 [shape = 'u8[16384]{0}', space=vmem, size = 0x4000, scoped, tag = 'output window, operand 0']
    %8 = vsyncpa [#allocation3], 0
    %9 = vsyncpa [#allocation4], 0
    %s10 = scalar_lea.sflag [#allocation4], 1
    %11 = vsyncpa %s10, 0
    loop: start=0, step=1, limit=4
    $region2: #{tpu_custom_call.1} parent=1 // loop_pre_header
      _
    $region3: #{tpu_custom_call.1} parent=1 // loop_header
      %s13 = sphi 0, %s17
      %p14 = scmp.ge.s32.totalorder %s13, 4
      %s23 = sphi 0, %s25
      %s26 = sphi 0, %s23
      %s27 = sphi 0, %s26
      %s43 = sphi 0, %s27
      %s47 = sphi 0, %s47
      %s49 = sphi 0, %s47
      %s50 = sphi 0, %s49
      %s64 = sphi 0, %s50
      %s68 = sphi 0, %s68
      %s70 = sphi 0, %s68
      %s71 = sphi 0, %s70
      %s85 = sphi 0, %s71
      %s91 = sphi 0, %s93
      %s94 = sphi 0, %s91
      %s95 = sphi 0, %s94
      %s111 = sphi 0, %s95
    $region4: #{tpu_custom_call.1} parent=1 // loop_header_branch
      %16 = sbr.rel (%p14) target = $region8
    $region5: #{tpu_custom_call.1} parent=1 // loop_body
      %s18 = ssub.s32 %s13, 1
      %s19 = ssub.s32 %s13, 2
      %s20 = sadd.s32 %s13, 1
      %s21 = ssub.s32 %s13, %s20
      %p22 = scmp.eq.s32.totalorder %s21, 0
      %s24 = sadd.s32 %s23, 1
      %s25 = scalar_select %p22, %s23, %s24
      %p28 = pneg %p22
      %p29 = scmp.eq.s32.totalorder %s13, 1
      %p30 = por %p28, %p29
      %p31 = scmp.ne.s32.totalorder %s23, %s26
      %p32 = scmp.eq.s32.totalorder %s13, 0
      %p33 = por %p31, %p32
      %p34 = scmp.ne.s32.totalorder %s23, %s26
      %p35 = scmp.eq.s32.totalorder %s18, 1
      %p36 = por %p34, %p35
      %p37 = scmp.ne.s32.totalorder %s26, %s27
      %p38 = scmp.eq.s32.totalorder %s18, 0
      %p39 = por %p37, %p38
      %p40 = scmp.ne.s32.totalorder %s26, %s27
      %p41 = scmp.eq.s32.totalorder %s19, 1
      %p42 = por %p40, %p41
      %p44 = scmp.ne.s32.totalorder %s27, %s43
      %p45 = scmp.eq.s32.totalorder %s19, 0
      %p46 = por %p44, %p45
      %s48 = sadd.s32 %s47, 1
      %p51 = scmp.eq.s32.totalorder %s13, 1
      %p52 = scmp.ne.s32.totalorder %s47, %s49
      %p53 = scmp.eq.s32.totalorder %s13, 0
      %p54 = por %p52, %p53
      %p55 = scmp.ne.s32.totalorder %s47, %s49
      %p56 = scmp.eq.s32.totalorder %s18, 1
      %p57 = por %p55, %p56
      %p58 = scmp.ne.s32.totalorder %s49, %s50
      %p59 = scmp.eq.s32.totalorder %s18, 0
      %p60 = por %p58, %p59
      %p61 = scmp.ne.s32.totalorder %s49, %s50
      %p62 = scmp.eq.s32.totalorder %s19, 1
      %p63 = por %p61, %p62
      %p65 = scmp.ne.s32.totalorder %s50, %s64
      %p66 = scmp.eq.s32.totalorder %s19, 0
      %p67 = por %p65, %p66
      %s69 = sadd.s32 %s68, 1
      %p72 = scmp.eq.s32.totalorder %s13, 1
      %p73 = scmp.ne.s32.totalorder %s68, %s70
      %p74 = scmp.eq.s32.totalorder %s13, 0
      %p75 = por %p73, %p74
      %p76 = scmp.ne.s32.totalorder %s68, %s70
      %p77 = scmp.eq.s32.totalorder %s18, 1
      %p78 = por %p76, %p77
      %p79 = scmp.ne.s32.totalorder %s70, %s71
      %p80 = scmp.eq.s32.totalorder %s18, 0
      %p81 = por %p79, %p80
      %p82 = scmp.ne.s32.totalorder %s70, %s71
      %p83 = scmp.eq.s32.totalorder %s19, 1
      %p84 = por %p82, %p83
      %p86 = scmp.ne.s32.totalorder %s71, %s85
      %p87 = scmp.eq.s32.totalorder %s19, 0
      %p88 = por %p86, %p87
      %s89 = ssub.s32 %s13, %s20
      %p90 = scmp.eq.s32.totalorder %s89, 0
      %s92 = sadd.s32 %s91, 1
      %s93 = scalar_select %p90, %s91, %s92
      %p96 = pneg %p90
      %p97 = scmp.eq.s32.totalorder %s13, 1
      %p98 = por %p96, %p97
      %p99 = scmp.ne.s32.totalorder %s91, %s94
      %p100 = scmp.eq.s32.totalorder %s13, 0
      %p101 = por %p99, %p100
      %p102 = scmp.ne.s32.totalorder %s91, %s94
      %p103 = scmp.eq.s32.totalorder %s18, 1
      %p104 = por %p102, %p103
      %p105 = scmp.ne.s32.totalorder %s94, %s95
      %p106 = scmp.eq.s32.totalorder %s18, 0
      %p107 = por %p105, %p106
      %p108 = scmp.ne.s32.totalorder %s94, %s95
      %p109 = scmp.eq.s32.totalorder %s19, 1
      %p110 = por %p108, %p109
      %p112 = scmp.ne.s32.totalorder %s95, %s111
      %p113 = scmp.eq.s32.totalorder %s19, 0
      %p114 = por %p112, %p113
      %p115 = scmp.le.s32.totalorder 1, %s13
      %p116 = scmp.lt.s32.totalorder %s13, 3
      %p117 = pnand %p115, %p116
      %p118 = pneg %p117
      // Predicated region
      $region9: #{tpu_custom_call.1} parent=5 // pred_check
        _
      $region10: #{tpu_custom_call.1} parent=5 // pred_check_branch
        %120 = sbr.rel (%p117) target = $region12
      $region11: #{tpu_custom_call.1} parent=5 // pred_region
        %s121 = ssub.s32 %s13, 1
        // Predicated region
        $region13: #{tpu_custom_call.1} parent=11 // pred_check
          %p122 = pneg %p60
        $region14: #{tpu_custom_call.1} parent=11 // pred_check_branch
          %124 = sbr.rel (%p122) target = $region16
        $region15: #{tpu_custom_call.1} parent=11 // pred_region
          %s126 = ssub.s32 1024, 1024
          %127 = vsyncadd [#allocation3], %s126
          %s128 = sshll.u32 [#allocation2], 4
          %s129 = int_to_ptr.vmem [resolvable:$true] %s128
          %134 = dma.hbm_to_vmem [thread:$0]  %s1, 1024, %s129, [#allocation3], 128, 128, 8
        $region16: #{tpu_custom_call.1} parent=11 // pred_fallthru
          _
        // Predicated region
        $region17: #{tpu_custom_call.1} parent=11 // pred_check
          %p135 = pneg %p81
        $region18: #{tpu_custom_call.1} parent=11 // pred_check_branch
          %137 = sbr.rel (%p135) target = $region20
        $region19: #{tpu_custom_call.1} parent=11 // pred_region
          _
        $region20: #{tpu_custom_call.1} parent=11 // pred_fallthru
          _
      $region12: #{tpu_custom_call.1} parent=5 // pred_fallthru
        _
      %p138 = scmp.lt.s32.totalorder %s13, 2
      // Predicated region
      $region21: #{tpu_custom_call.1} parent=5 // pred_check
        %p139 = pneg %p138
      $region22: #{tpu_custom_call.1} parent=5 // pred_check_branch
        %141 = sbr.rel (%p139) target = $region24
      $region23: #{tpu_custom_call.1} parent=5 // pred_region
        // Predicated region
        $region25: #{tpu_custom_call.1} parent=23 // pred_check
          %p142 = pneg %p33
        $region26: #{tpu_custom_call.1} parent=23 // pred_check_branch
          %144 = sbr.rel (%p142) target = $region28
        $region27: #{tpu_custom_call.1} parent=23 // pred_region
          %s145 = smul.u32 2, %s13
          %p146 = scmp.lt.s32.totalorder %s145, 3
          %s147 = scalar_select %p146, %s145, 3
          %s148 = smul.addr %s147, 8
          %s149 = scalar_lea.vmem %s0, %s148
          %s150 = smul.u32 2, %s13
        $region28: #{tpu_custom_call.1} parent=23 // pred_fallthru
          _
      $region24: #{tpu_custom_call.1} parent=5 // pred_fallthru
        _
      %p151 = scmp.le.s32.totalorder 1, %s13
      %p152 = scmp.lt.s32.totalorder %s13, 3
      %p153 = pnand %p151, %p152
      %p154 = pneg %p153
      // Predicated region
      $region29: #{tpu_custom_call.1} parent=5 // pred_check
        _
      $region30: #{tpu_custom_call.1} parent=5 // pred_check_branch
        %156 = sbr.rel (%p153) target = $region32
      $region31: #{tpu_custom_call.1} parent=5 // pred_region
        %s157 = ssub.s32 %s13, 1
        // Predicated region
        $region33: #{tpu_custom_call.1} parent=31 // pred_check
          %p158 = pneg %p60
        $region34: #{tpu_custom_call.1} parent=31 // pred_check_branch
          %160 = sbr.rel (%p158) target = $region36
        $region35: #{tpu_custom_call.1} parent=31 // pred_region
          %161 = dma.done [#allocation3], 1024
        $region36: #{tpu_custom_call.1} parent=31 // pred_fallthru
          _
        %s162 = smul.u32 2, %s18
        %p163 = scmp.lt.s32.totalorder %s162, 3
        %s164 = scalar_select %p163, %s162, 3
        %s165 = smul.addr %s164, 8
        %s166 = scalar_lea.vmem %s0, %s165
        %p167 = pneg %p39
        %p168 = pneg %p36
        %p169 = pneg %p60
        %p170 = pneg %p57
        %p171 = pneg %p81
        %p172 = pneg %p78
        %p173 = pneg %p107
        %p174 = pneg %p104
        %s175 = sand.u32 %s94, 1
        %s176 = scalar_lea.sflag [#allocation4], %s175
        %s177 = sand.u32 %s94, 1
        %s178 = smul.addr %s177, 16
        %s179 = scalar_lea.vmem [#allocation5], %s178
        %s180 = smul.u32 2, %s18
        %p181 = scmp.lt.s32.totalorder %s180, 3
        %s182 = scalar_select %p181, %s180, 3
        %s183 = smul.addr %s182, 8
        %s184 = scalar_lea.vmem %s0, %s183
        %s185 = smul.u32 2, %s18
        %s186 = smul.u32 2, %s18
        %v187 = vld [vmem:[%s184] sm:$0xff]
        %v188 = vld [vmem:[%s184 + $0x8] sm:$0xff]
        %v189 = vlaneseq
        %v190 = vand.u32 %v189, 127
        %191 = vset.pattern.permute.xlu0 0
        %192 = vperm.xlu0 %191, %v187
        %v193 = vpop.permute.xlu0 %192
        %194 = vset.pattern.permute.xlu0 0
        %195 = vperm.xlu0 %194, %v188
        %v196 = vpop.permute.xlu0 %195
        %vm197 = vcmp.eq.s32.totalorder %v193, %v190
        %vm198 = vcmp.eq.s32.totalorder %v196, %v190
        %v199 = vsel %vm197, 1, 0
        %v200 = vsel %vm198, 1, 0
        %v201 = vcvt.s32.f32 %v199
        %v202 = vcvt.s32.f32 %v200
        %v203 = vld [vmem:[#allocation2] sm:$0xff]
        %v204 = vld [vmem:[#allocation2 + $0x8] sm:$0xff]
        %v205 = vld [vmem:[#allocation2 + $0x10] sm:$0xff]
        %v206 = vld [vmem:[#allocation2 + $0x18] sm:$0xff]
        %v207 = vld [vmem:[#allocation2 + $0x20] sm:$0xff]
        %v208 = vld [vmem:[#allocation2 + $0x28] sm:$0xff]
        %v209 = vld [vmem:[#allocation2 + $0x30] sm:$0xff]
        %v210 = vld [vmem:[#allocation2 + $0x38] sm:$0xff]
        %vm211 = vcmask 523264
        %v213 = vsel %vm211, %v201, 0
        %v216 = vsel %vm211, %v202, 0
        %218 = vmatprep.subr.mxu0 0.0
        %219 = vmatpush1.msra.mxu0 %v203
        %220 = vmatprep.subr.mxu0 0.0
        %221 = vmatpush1.msra.mxu0 %v204
        %222 = vmatprep.subr.mxu0 0.0
        %223 = vmatpush1.msra.mxu0 %v205
        %224 = vmatprep.subr.mxu0 0.0
        %225 = vmatpush1.msra.mxu0 %v206
        %226 = vmatprep.subr.mxu0 0.0
        %227 = vmatpush1.msra.mxu0 %v207
        %228 = vmatprep.subr.mxu0 0.0
        %229 = vmatpush1.msra.mxu0 %v208
        %230 = vmatprep.subr.mxu0 0.0
        %231 = vmatpush1.msra.mxu0 %v209
        %232 = vmatprep.subr.mxu0 0.0
        %233 = vmatpush1.msra.mxu0 %v210
        %234 = vmatprep.subr.mxu0 0.0
        %235 = vmatpush1.msra.mxu0 0.0
        %236 = vmatprep.subr.mxu0 0.0
        %237 = vmatpush1.msra.mxu0 0.0
        %238 = vmatprep.subr.mxu0 0.0
        %239 = vmatpush1.msra.mxu0 0.0
        %240 = vmatprep.subr.mxu0 0.0
        %241 = vmatpush1.msra.mxu0 0.0
        %242 = vmatprep.subr.mxu0 0.0
        %243 = vmatpush1.msra.mxu0 0.0
        %244 = vmatprep.subr.mxu0 0.0
        %245 = vmatpush1.msra.mxu0 0.0
        %246 = vmatprep.subr.mxu0 0.0
        %247 = vmatpush1.msra.mxu0 0.0
        %248 = vmatprep.subr.mxu0 0.0
        %249 = vmatpush1.msra.mxu0 0.0
        %250 = vmatprep.subr.mxu0 0.0
        %251 = vmatpush1.msra.mxu0 0.0
        %252 = vmatprep.subr.mxu0 0.0
        %253 = vmatpush1.msra.mxu0 0.0
        %254 = vmatprep.subr.mxu0 0.0
        %255 = vmatpush1.msra.mxu0 0.0
        %256 = vmatprep.subr.mxu0 0.0
        %257 = vmatpush1.msra.mxu0 0.0
        %258 = vmatprep.subr.mxu0 0.0
        %259 = vmatpush1.msra.mxu0 0.0
        %260 = vmatprep.subr.mxu0 0.0
        %261 = vmatpush1.msra.mxu0 0.0
        %262 = vmatprep.subr.mxu0 0.0
        %263 = vmatpush1.msra.mxu0 0.0
        %264 = vmatprep.subr.mxu0 0.0
        %265 = vmatpush1.msra.mxu0 0.0
        %266 = vmatprep.subr.mxu0 0.0
        %267 = vmatpush1.msra.mxu0 0.0
        %268 = vmatprep.subr.mxu0 0.0
        %269 = vmatpush1.msra.mxu0 0.0
        %270 = vmatprep.subr.mxu0 0.0
        %271 = vmatpush1.msra.mxu0 0.0
        %272 = vmatprep.subr.mxu0 0.0
        %273 = vmatpush1.msra.mxu0 0.0
        %274 = vmatprep.subr.mxu0 0.0
        %275 = vmatpush1.msra.mxu0 0.0
        %276 = vmatprep.subr.mxu0 0.0
        %277 = vmatpush1.msra.mxu0 0.0
        %278 = vmatprep.subr.mxu0 0.0
        %279 = vmatpush1.msra.mxu0 0.0
        %280 = vmatprep.subr.mxu0 0.0
        %281 = vmatpush1.msra.mxu0 0.0
        %282 = vmatprep.mubr.f32.mxu0 0.0
        %283 = vmatmul.mubr.f32.gmra.mrb[0].mxu0 %v213
        %v284 = vpop.f32.mrb[0].mxu0
        %v285 = vadd.f32 0.0, %v284
        %v286 = vpop.f32.mrb[0].mxu0
        %287 = vmatprep.mubr.f32.mxu0 0.0
        %288 = vmatmul.mubr.f32.gmra.mrb[0].mxu0 %v216
        %v289 = vpop.f32.mrb[0].mxu0
        %v290 = vadd.f32 0.0, %v289
        %v291 = vpop.f32.mrb[0].mxu0
        %292 = vdwg.mxu0
        %v293 = vld [vmem:[%s2] sm:$0xff]
        %v294 = vadd.f32 %v285, %v293
        %v295 = vadd.f32 %v290, %v293
        %296 = vst [vmem:[%s179] sm:$0xff] %v294
        %297 = vst [vmem:[%s179 + $0x8] sm:$0xff] %v295
        %s298 = sand.u32 %s94, 1
        %s299 = scalar_lea.sflag [#allocation4], %s298
        %s300 = sand.u32 %s94, 1
        %s301 = smul.addr %s300, 16
        %s302 = scalar_lea.vmem [#allocation5], %s301
        // Predicated region
        $region37: #{tpu_custom_call.1} parent=31 // pred_check
          %p303 = pneg %p104
        $region38: #{tpu_custom_call.1} parent=31 // pred_check_branch
          %305 = sbr.rel (%p303) target = $region40
        $region39: #{tpu_custom_call.1} parent=31 // pred_region
          %s306 = smul.u32 2, %s18
          %s308 = ssub.s32 256, 256
          %309 = vsyncadd %s299, %s308
          %s310 = smul.addr %s306, 128
          %s311 = scalar_lea.hbm %s3, %s310
          %s312 = sshll.u32 %s302, 4
          %s313 = int_to_ptr.vmem [resolvable:$true] %s312
          %318 = dma.vmem_to_hbm [thread:$0]  %s313, 256, %s311, %s299, 128, 128, 8
        $region40: #{tpu_custom_call.1} parent=31 // pred_fallthru
          _
      $region32: #{tpu_custom_call.1} parent=5 // pred_fallthru
        _
      %p319 = scmp.le.s32.totalorder 2, %s13
      // Predicated region
      $region41: #{tpu_custom_call.1} parent=5 // pred_check
        %p320 = pneg %p319
      $region42: #{tpu_custom_call.1} parent=5 // pred_check_branch
        %322 = sbr.rel (%p320) target = $region44
      $region43: #{tpu_custom_call.1} parent=5 // pred_region
        %s323 = ssub.s32 %s13, 2
        // Predicated region
        $region45: #{tpu_custom_call.1} parent=43 // pred_check
          %p324 = pneg %p110
        $region46: #{tpu_custom_call.1} parent=43 // pred_check_branch
          %326 = sbr.rel (%p324) target = $region48
        $region47: #{tpu_custom_call.1} parent=43 // pred_region
          %s327 = sand.u32 %s95, 1
          %s328 = scalar_lea.sflag [#allocation4], %s327
          %s329 = sand.u32 %s95, 1
          %s330 = smul.addr %s329, 16
          %s331 = scalar_lea.vmem [#allocation5], %s330
          %332 = dma.done %s328, 256
        $region48: #{tpu_custom_call.1} parent=43 // pred_fallthru
          _
      $region44: #{tpu_custom_call.1} parent=5 // pred_fallthru
        _
    $region6: #{tpu_custom_call.1} parent=1 // loop_footer
      %s17 = sadd.s32 1, %s13
    $region7: #{tpu_custom_call.1} parent=1 // loop_footer_branch
      %12 = sbr.rel target = $region3
    $region8: #{tpu_custom_call.1} parent=1 // loop_exit
      _
    %333 = vsyncpa [#allocation3], 1
    %s334 = scalar_lea.sflag [#allocation3], 1
    %335 = vsyncpa %s334, 1
    %336 = vsyncpa [#allocation4], 1
    %s337 = scalar_lea.sflag [#allocation4], 1
    %338 = vsyncpa %s337, 1

</llo_original>
